<compile_context>
chip_gen: v6e
topology: v6e:2x2x1
jax: 0.10.0
libtpu: 0.0.40
codegen_flags: <defaults>
</compile_context>

<pallas_src>
import jax
import jax.numpy as jnp
from jax.experimental import pallas as pl
from jax.experimental.pallas import tpu as pltpu

STATE_DIM = 5
MEAS_DIM = 4
Q_P_MIN_EPS = 1e-7

# Batch elements written per grid step.  Must be a multiple of 1024 so that
# tb*25/8 and tb*16/8 are multiples of 128 (fully dense (8,128) tiles).
_TB_ALIGN = 1024
_BATCH_TILE = 8192


def _round_up(x, m):
    return ((x + m - 1) // m) * m


def _choose_tile(batch, batch_tile):
    """Pick (tile, n_steps): tile is a multiple of 1024; >=2 steps for big B."""
    batch_tile = max(_TB_ALIGN, _round_up(batch_tile, _TB_ALIGN))
    tb = min(batch_tile, _round_up(batch, _TB_ALIGN))
    n_steps = pl.cdiv(batch, tb)
    # v7x megacore: if a single tile would swallow a large batch, split it in
    # two so the "parallel" grid axis can shard across both TensorCores.
    if n_steps == 1 and batch > 4 * _TB_ALIGN:
        tb = _round_up(pl.cdiv(batch, 2), _TB_ALIGN)
        n_steps = pl.cdiv(batch, tb)
    return tb, n_steps


def _tril_llt(mat, eps):
    """tril(mat) @ tril(mat).T (+ eps * I), in f32.  Runs in the wrapper."""
    m = mat.astype(jnp.float32)
    L = jnp.tril(m)
    out = L @ L.T
    if eps:
        out = out + jnp.float32(eps) * jnp.eye(m.shape[0], dtype=jnp.float32)
    return out


def _broadcast_store_kernel(q_row_ref, r_row_ref, p0_row_ref,
                            qb_ref, rb_ref, p0b_ref):
    # Pure full-sublane / full-lane stores.  Inputs are the same block every
    # grid step, so Pallas DMAs them into VMEM once and keeps them resident.
    qb_ref[...] = q_row_ref[...]
    rb_ref[...] = r_row_ref[...]
    p0b_ref[...] = p0_row_ref[...]


def crosscov_noise_model_forward(x_hat, qd, rd, p0d, *, batch_tile=_BATCH_TILE):
    """Returns (Qb, Rb, P0b) with shapes (B,5,5), (B,4,4), (B,5,5), f32."""
    batch = x_hat.shape[0]

    # Batch-invariant compute hoisted out of the kernel (eps only on Q, P0).
    q = _tril_llt(qd, Q_P_MIN_EPS)      # (5, 5)
    r = _tril_llt(rd, 0.0)              # (4, 4)
    p0 = _tril_llt(p0d, Q_P_MIN_EPS)    # (5, 5)

    if batch == 0:
        # Guard: a zero-size grid / pallas_call is not supported.
        return (jnp.zeros((0, STATE_DIM, STATE_DIM), jnp.float32),
                jnp.zeros((0, MEAS_DIM, MEAS_DIM), jnp.float32),
                jnp.zeros((0, STATE_DIM, STATE_DIM), jnp.float32))

    tb, n_steps = _choose_tile(batch, batch_tile)
    padded = tb * n_steps
    wq = tb * STATE_DIM * STATE_DIM // 8   # multiple of 128 (tb % 1024 == 0)
    wr = tb * MEAS_DIM * MEAS_DIM // 8     # multiple of 128

    # One per-step slab per output stream, built once in XLA (size O(tb)):
    # tb row-major copies of the flattened matrix, viewed as an (8, W) block.
    q_row = jnp.tile(q.reshape(-1), tb).reshape(8, wq)
    r_row = jnp.tile(r.reshape(-1), tb).reshape(8, wr)
    p0_row = jnp.tile(p0.reshape(-1), tb).reshape(8, wq)

    out_shapes = (
        jax.ShapeDtypeStruct((n_steps * 8, wq), jnp.float32),
        jax.ShapeDtypeStruct((n_steps * 8, wr), jnp.float32),
        jax.ShapeDtypeStruct((n_steps * 8, wq), jnp.float32),
    )

    elems_per_item = 2 * STATE_DIM * STATE_DIM + MEAS_DIM * MEAS_DIM  # 66
    cost = pl.CostEstimate(
        flops=0,
        transcendentals=0,
        bytes_accessed=(padded + tb) * elems_per_item * 4,
    )

    qb2d, rb2d, p0b2d = pl.pallas_call(
        _broadcast_store_kernel,
        out_shape=out_shapes,
        grid_spec=pltpu.PrefetchScalarGridSpec(
            num_scalar_prefetch=0,
            grid=(n_steps,),
            in_specs=[
                pl.BlockSpec((8, wq), lambda b: (0, 0)),
                pl.BlockSpec((8, wr), lambda b: (0, 0)),
                pl.BlockSpec((8, wq), lambda b: (0, 0)),
            ],
            out_specs=[
                pl.BlockSpec((8, wq), lambda b: (b, 0)),
                pl.BlockSpec((8, wr), lambda b: (b, 0)),
                pl.BlockSpec((8, wq), lambda b: (b, 0)),
            ],
        ),
        compiler_params=pltpu.CompilerParams(
            dimension_semantics=("parallel",),
        ),
        cost_estimate=cost,
    )(q_row, r_row, p0_row)

    # Free row-major reshapes back to (padded, n, n).
    qb = qb2d.reshape(padded, STATE_DIM, STATE_DIM)
    rb = rb2d.reshape(padded, MEAS_DIM, MEAS_DIM)
    p0b = p0b2d.reshape(padded, STATE_DIM, STATE_DIM)
    if padded != batch:
        # TODO(synk): for write-bound callers, keep the padded output and let
        # the consumer slice lazily; this slice is an extra HBM read+write.
        qb, rb, p0b = qb[:batch], rb[:batch], p0b[:batch]
    return qb, rb, p0b


def _init_params():
    """Deterministic parameter init matching the PyTorch __init__."""
    qd = jnp.diag(jnp.sqrt(jnp.array([0.001, 0.001, 0.01, 0.01, 0.0001],
                                     dtype=jnp.float32)))
    rd = jnp.diag(jnp.sqrt(jnp.array([50.0, 50.0, 0.1, 0.1],
                                     dtype=jnp.float32)))
    p0d = jnp.diag(jnp.sqrt(jnp.array([0.001, 0.001, 0.001, 0.001, 0.0001],
                                      dtype=jnp.float32)))
    return qd, rd, p0d


def _reference(x_hat, qd, rd, p0d):
    """Pure-JAX reference of the PyTorch forward."""
    b = x_hat.shape[0]

    def llt(m, n, eps):
        L = jnp.tril(m)
        return L @ L.T + jnp.eye(n, dtype=m.dtype) * eps

    q = llt(qd, STATE_DIM, Q_P_MIN_EPS)
    r = llt(rd, MEAS_DIM, 0.0)
    p0 = llt(p0d, STATE_DIM, Q_P_MIN_EPS)
    return (jnp.broadcast_to(q, (b, STATE_DIM, STATE_DIM)),
            jnp.broadcast_to(r, (b, MEAS_DIM, MEAS_DIM)),
            jnp.broadcast_to(p0, (b, STATE_DIM, STATE_DIM)))


if __name__ == "__main__":
    key = jax.random.PRNGKey(0)
    batch = 2
    # x_hat is only used for its batch dimension in the forward pass.
    x_hat = jax.random.normal(key, (batch, STATE_DIM), dtype=jnp.float32)

    qd, rd, p0d = _init_params()
    # Perturb params slightly (deterministically) so the kernel exercises
    # off-diagonal tril / L@L.T paths, not just diagonals.
    k1, k2, k3 = jax.random.split(key, 3)
    qd = qd + 0.01 * jax.random.normal(k1, qd.shape, dtype=jnp.float32)
    rd = rd + 0.01 * jax.random.normal(k2, rd.shape, dtype=jnp.float32)
    p0d = p0d + 0.01 * jax.random.normal(k3, p0d.shape, dtype=jnp.float32)

    # Main small-shape run (single grid step, batch padded to one 1024 tile).
    qb, rb, p0b = crosscov_noise_model_forward(x_hat, qd, rd, p0d)
    jax.block_until_ready((qb, rb, p0b))

    qr, rr, p0r = _reference(x_hat, qd, rd, p0d)
    assert qb.shape == (batch, STATE_DIM, STATE_DIM)
    assert rb.shape == (batch, MEAS_DIM, MEAS_DIM)
    assert p0b.shape == (batch, STATE_DIM, STATE_DIM)
    assert jnp.allclose(qb, qr, atol=1e-6), "Q mismatch"
    assert jnp.allclose(rb, rr, atol=1e-5), "R mismatch"
    assert jnp.allclose(p0b, p0r, atol=1e-6), "P0 mismatch"

    # Second check: multi-step grid + padded tail slice (still small data).
    batch2 = 2500
    x_hat2 = jax.random.normal(key, (batch2, STATE_DIM), dtype=jnp.float32)
    qb2, rb2, p0b2 = crosscov_noise_model_forward(
        x_hat2, qd, rd, p0d, batch_tile=1024)
    jax.block_until_ready((qb2, rb2, p0b2))
    qr2, rr2, p0r2 = _reference(x_hat2, qd, rd, p0d)
    assert qb2.shape == (batch2, STATE_DIM, STATE_DIM)
    assert rb2.shape == (batch2, MEAS_DIM, MEAS_DIM)
    assert jnp.allclose(qb2, qr2, atol=1e-6), "Q mismatch (multi-step)"
    assert jnp.allclose(rb2, rr2, atol=1e-5), "R mismatch (multi-step)"
    assert jnp.allclose(p0b2, p0r2, atol=1e-6), "P0 mismatch (multi-step)"

    # Edge case: batch == 0 (guarded, no pallas_call).
    q0, r0, p00 = crosscov_noise_model_forward(
        jnp.zeros((0, STATE_DIM), jnp.float32), qd, rd, p0d)
    assert q0.shape == (0, STATE_DIM, STATE_DIM)
    assert r0.shape == (0, MEAS_DIM, MEAS_DIM)

    print("KERNEL_OK")
</pallas_src>

<mosaic_0001>
module attributes {stable_mosaic.version = 11 : i64} {
  func.func @_broadcast_store_kernel(%arg0: i32, %arg1: memref<8x3200xf32, #tpu.memory_space<vmem>>, %arg2: memref<8x2048xf32, #tpu.memory_space<vmem>>, %arg3: memref<8x3200xf32, #tpu.memory_space<vmem>>, %arg4: memref<8x3200xf32, #tpu.memory_space<vmem>>, %arg5: memref<8x2048xf32, #tpu.memory_space<vmem>>, %arg6: memref<8x3200xf32, #tpu.memory_space<vmem>>) attributes {dimension_semantics = [#tpu.dimension_semantics<parallel>], iteration_bounds = array<i64: 1>, scalar_prefetch = 0 : i64, scratch_operands = 0 : i64, tpu.core_type = #tpu.core_type<tc>, window_params = [{pipeline_mode = #tpu.pipeline_mode<synchronous>, transform_indices = @transform_0, window_bounds = array<i64: 8, 3200>}, {pipeline_mode = #tpu.pipeline_mode<synchronous>, transform_indices = @transform_1, window_bounds = array<i64: 8, 2048>}, {pipeline_mode = #tpu.pipeline_mode<synchronous>, transform_indices = @transform_2, window_bounds = array<i64: 8, 3200>}, {transform_indices = @transform_3, window_bounds = array<i64: 8, 3200>}, {transform_indices = @transform_4, window_bounds = array<i64: 8, 2048>}, {transform_indices = @transform_5, window_bounds = array<i64: 8, 3200>}]} {
    %c0 = arith.constant 0 : index
    %c0_0 = arith.constant 0 : index
    %0 = vector.load %arg1[%c0, %c0_0] : memref<8x3200xf32, #tpu.memory_space<vmem>>, vector<8x3200xf32>
    %c0_1 = arith.constant 0 : index
    %c0_2 = arith.constant 0 : index
    %1 = vector.load %arg4[%c0_1, %c0_2] : memref<8x3200xf32, #tpu.memory_space<vmem>>, vector<8x3200xf32>
    tpu.vector_store %arg4[%c0_1, %c0_2], %0 {strides = array<i32>} : memref<8x3200xf32, #tpu.memory_space<vmem>>, vector<8x3200xf32>,
    %c0_3 = arith.constant 0 : index
    %c0_4 = arith.constant 0 : index
    %2 = vector.load %arg2[%c0_3, %c0_4] : memref<8x2048xf32, #tpu.memory_space<vmem>>, vector<8x2048xf32>
    %c0_5 = arith.constant 0 : index
    %c0_6 = arith.constant 0 : index
    %3 = vector.load %arg5[%c0_5, %c0_6] : memref<8x2048xf32, #tpu.memory_space<vmem>>, vector<8x2048xf32>
    tpu.vector_store %arg5[%c0_5, %c0_6], %2 {strides = array<i32>} : memref<8x2048xf32, #tpu.memory_space<vmem>>, vector<8x2048xf32>,
    %c0_7 = arith.constant 0 : index
    %c0_8 = arith.constant 0 : index
    %4 = vector.load %arg3[%c0_7, %c0_8] : memref<8x3200xf32, #tpu.memory_space<vmem>>, vector<8x3200xf32>
    %c0_9 = arith.constant 0 : index
    %c0_10 = arith.constant 0 : index
    %5 = vector.load %arg6[%c0_9, %c0_10] : memref<8x3200xf32, #tpu.memory_space<vmem>>, vector<8x3200xf32>
    tpu.vector_store %arg6[%c0_9, %c0_10], %4 {strides = array<i32>} : memref<8x3200xf32, #tpu.memory_space<vmem>>, vector<8x3200xf32>,
    return
  }
  func.func @transform_0(%arg0: i32) -> (i32, i32) {
    %c0_i32 = arith.constant 0 : i32
    %c0_i32_0 = arith.constant 0 : i32
    %c0_i32_1 = arith.constant 0 : i32
    return %c0_i32, %c0_i32_0 : i32, i32
  }
  func.func @transform_1(%arg0: i32) -> (i32, i32) {
    %c0_i32 = arith.constant 0 : i32
    %c0_i32_0 = arith.constant 0 : i32
    %c0_i32_1 = arith.constant 0 : i32
    return %c0_i32, %c0_i32_0 : i32, i32
  }
  func.func @transform_2(%arg0: i32) -> (i32, i32) {
    %c0_i32 = arith.constant 0 : i32
    %c0_i32_0 = arith.constant 0 : i32
    %c0_i32_1 = arith.constant 0 : i32
    return %c0_i32, %c0_i32_0 : i32, i32
  }
  func.func @transform_3(%arg0: i32) -> (i32, i32) {
    %c0_i32 = arith.constant 0 : i32
    %c0_i32_0 = arith.constant 0 : i32
    return %arg0, %c0_i32 : i32, i32
  }
  func.func @transform_4(%arg0: i32) -> (i32, i32) {
    %c0_i32 = arith.constant 0 : i32
    %c0_i32_0 = arith.constant 0 : i32
    return %arg0, %c0_i32 : i32, i32
  }
  func.func @transform_5(%arg0: i32) -> (i32, i32) {
    %c0_i32 = arith.constant 0 : i32
    %c0_i32_0 = arith.constant 0 : i32
    return %arg0, %c0_i32 : i32, i32
  }
}

</mosaic_0001>

<llo_original>
// kernel: tpu_custom_call.1
$region0: #{tpu_custom_call.1}
  #allocation0 [shape = 'u32[]', space=smem, size = 0x4, offset = 0x4, fixed_abs, tag = 'smem constant byte address 0x4 - core index']
  #allocation1 [shape = 'u32[144,128]{1,0:T(1,128)}', space=vmem, size = 0x12000, scoped, tag = 'internal scratch']
  %s0 = inlined_call_operand.hbm [shape: f32[8,3200], index: 0, kind: input, shape index: {}]
  %s1 = inlined_call_operand.hbm [shape: f32[8,2048], index: 1, kind: input, shape index: {}]
  %s2 = inlined_call_operand.hbm [shape: f32[8,3200], index: 2, kind: input, shape index: {}]
  %s3 = inlined_call_operand.hbm [shape: f32[8,3200], index: 3, kind: output, shape index: {0}]
  %s4 = inlined_call_operand.hbm [shape: f32[8,2048], index: 4, kind: output, shape index: {1}]
  %s5 = inlined_call_operand.hbm [shape: f32[8,3200], index: 5, kind: output, shape index: {2}]
  %6 = xla_tuple %s3, %s4, %s5
  %s7 = sld [smem:[#allocation0]]
  $region50: #{tpu_custom_call.1} parent=0
    _
  %s9 = ssub.s32 1, %s7
  %s10 = scalar_select 0, %s9, %s7
  $region1: #{tpu_custom_call.1} parent=0
    #allocation2 [shape = 'u8[102400]{0}', space=vmem, size = 0x19000, scoped, tag = 'input window, operand 0, single buffered']
    #allocation3 [shape = 's32[1]{0}', space=sflag, size = 0x4, scoped, tag = 'scoped memory for tpu_custom_call.1']
    #allocation4 [shape = 's32[1]{0}', space=sflag, size = 0x4, scoped, tag = 'scoped memory for tpu_custom_call.1']
    #allocation5 [shape = 'u8[65536]{0}', space=vmem, size = 0x10000, scoped, tag = 'input window, operand 1, single buffered']
    #allocation6 [shape = 's32[1]{0}', space=sflag, size = 0x4, scoped, tag = 'scoped memory for tpu_custom_call.1']
    #allocation7 [shape = 'u8[102400]{0}', space=vmem, size = 0x19000, scoped, tag = 'input window, operand 2, single buffered']
    #allocation8 [shape = 'u8[102400]{0}', space=vmem, size = 0x19000, scoped, tag = 'output window, operand 0, single buffered']
    #allocation9 [shape = 'u8[65536]{0}', space=vmem, size = 0x10000, scoped, tag = 'output window, operand 1, single buffered']
    #allocation10 [shape = 's32[1]{0}', space=sflag, size = 0x4, scoped, tag = 'scoped memory for tpu_custom_call.1']
    #allocation11 [shape = 'u8[102400]{0}', space=vmem, size = 0x19000, scoped, tag = 'output window, operand 2, single buffered']
    %11 = vsyncpa [#allocation3], 0
    %12 = vsyncpa [#allocation6], 0
    %13 = vsyncpa [#allocation4], 0
    %14 = vsyncpa [#allocation10], 0
    // Predicated region
    $region2: #{tpu_custom_call.1} parent=1 // pred_check
      _
    $region3: #{tpu_custom_call.1} parent=1 // pred_check_branch
      %16 = sbr.rel (0) target = $region5
    $region4: #{tpu_custom_call.1} parent=1 // pred_region
      %s18 = ssub.s32 3200, 3200
      %19 = vsyncadd [#allocation3], %s18
      %s21 = sshll.u32 [#allocation2], 4
      %s22 = int_to_ptr.vmem [resolvable:$true] %s21
      %24 = dma.hbm_to_vmem [thread:$0]  %s0, 3200, %s22, [#allocation3]
    $region5: #{tpu_custom_call.1} parent=1 // pred_fallthru
      _
    // Predicated region
    $region6: #{tpu_custom_call.1} parent=1 // pred_check
      _
    $region7: #{tpu_custom_call.1} parent=1 // pred_check_branch
      %26 = sbr.rel (0) target = $region9
    $region8: #{tpu_custom_call.1} parent=1 // pred_region
      %s28 = ssub.s32 2048, 2048
      %29 = vsyncadd [#allocation6], %s28
      %s31 = sshll.u32 [#allocation5], 4
      %s32 = int_to_ptr.vmem [resolvable:$true] %s31
      %34 = dma.hbm_to_vmem [thread:$0]  %s1, 2048, %s32, [#allocation6]
    $region9: #{tpu_custom_call.1} parent=1 // pred_fallthru
      _
    // Predicated region
    $region10: #{tpu_custom_call.1} parent=1 // pred_check
      _
    $region11: #{tpu_custom_call.1} parent=1 // pred_check_branch
      %36 = sbr.rel (0) target = $region13
    $region12: #{tpu_custom_call.1} parent=1 // pred_region
      %s38 = ssub.s32 3200, 3200
      %39 = vsyncadd [#allocation6], %s38
      %s41 = sshll.u32 [#allocation7], 4
      %s42 = int_to_ptr.vmem [resolvable:$true] %s41
      %44 = dma.hbm_to_vmem [thread:$0]  %s2, 3200, %s42, [#allocation6]
    $region13: #{tpu_custom_call.1} parent=1 // pred_fallthru
      _
    // Predicated region
    $region14: #{tpu_custom_call.1} parent=1 // pred_check
      _
    $region15: #{tpu_custom_call.1} parent=1 // pred_check_branch
      %46 = sbr.rel (0) target = $region17
    $region16: #{tpu_custom_call.1} parent=1 // pred_region
      %47 = dma.done [#allocation3], 3200
    $region17: #{tpu_custom_call.1} parent=1 // pred_fallthru
      _
    // Predicated region
    $region18: #{tpu_custom_call.1} parent=1 // pred_check
      _
    $region19: #{tpu_custom_call.1} parent=1 // pred_check_branch
      %49 = sbr.rel (0) target = $region21
    $region20: #{tpu_custom_call.1} parent=1 // pred_region
      %50 = dma.done [#allocation6], 2048
    $region21: #{tpu_custom_call.1} parent=1 // pred_fallthru
      _
    // Predicated region
    $region22: #{tpu_custom_call.1} parent=1 // pred_check
      _
    $region23: #{tpu_custom_call.1} parent=1 // pred_check_branch
      %52 = sbr.rel (0) target = $region25
    $region24: #{tpu_custom_call.1} parent=1 // pred_region
      %53 = dma.done [#allocation6], 3200
    $region25: #{tpu_custom_call.1} parent=1 // pred_fallthru
      _
    %v54 = vld [vmem:[#allocation2] sm:$0xff]
    %v55 = vld [vmem:[#allocation2 + $0x8] sm:$0xff]
    %v56 = vld [vmem:[#allocation2 + $0x10] sm:$0xff]
    %v57 = vld [vmem:[#allocation2 + $0x18] sm:$0xff]
    %v58 = vld [vmem:[#allocation2 + $0x20] sm:$0xff]
    %v59 = vld [vmem:[#allocation2 + $0x28] sm:$0xff]
    %v60 = vld [vmem:[#allocation2 + $0x30] sm:$0xff]
    %v61 = vld [vmem:[#allocation2 + $0x38] sm:$0xff]
    %v62 = vld [vmem:[#allocation2 + $0x40] sm:$0xff]
    %v63 = vld [vmem:[#allocation2 + $0x48] sm:$0xff]
    %v64 = vld [vmem:[#allocation2 + $0x50] sm:$0xff]
    %v65 = vld [vmem:[#allocation2 + $0x58] sm:$0xff]
    %v66 = vld [vmem:[#allocation2 + $0x60] sm:$0xff]
    %v67 = vld [vmem:[#allocation2 + $0x68] sm:$0xff]
    %v68 = vld [vmem:[#allocation2 + $0x70] sm:$0xff]
    %v69 = vld [vmem:[#allocation2 + $0x78] sm:$0xff]
    %v70 = vld [vmem:[#allocation2 + $0x80] sm:$0xff]
    %v71 = vld [vmem:[#allocation2 + $0x88] sm:$0xff]
    %v72 = vld [vmem:[#allocation2 + $0x90] sm:$0xff]
    %v73 = vld [vmem:[#allocation2 + $0x98] sm:$0xff]
    %v74 = vld [vmem:[#allocation2 + $0xa0] sm:$0xff]
    %v75 = vld [vmem:[#allocation2 + $0xa8] sm:$0xff]
    %v76 = vld [vmem:[#allocation2 + $0xb0] sm:$0xff]
    %v77 = vld [vmem:[#allocation2 + $0xb8] sm:$0xff]
    %v78 = vld [vmem:[#allocation2 + $0xc0] sm:$0xff]
    %79 = vst [vmem:[#allocation8] sm:$0xff] %v54
    %80 = vst [vmem:[#allocation8 + $0x8] sm:$0xff] %v55
    %81 = vst [vmem:[#allocation8 + $0x10] sm:$0xff] %v56
    %82 = vst [vmem:[#allocation8 + $0x18] sm:$0xff] %v57
    %83 = vst [vmem:[#allocation8 + $0x20] sm:$0xff] %v58
    %84 = vst [vmem:[#allocation8 + $0x28] sm:$0xff] %v59
    %85 = vst [vmem:[#allocation8 + $0x30] sm:$0xff] %v60
    %86 = vst [vmem:[#allocation8 + $0x38] sm:$0xff] %v61
    %87 = vst [vmem:[#allocation8 + $0x40] sm:$0xff] %v62
    %88 = vst [vmem:[#allocation8 + $0x48] sm:$0xff] %v63
    %89 = vst [vmem:[#allocation8 + $0x50] sm:$0xff] %v64
    %90 = vst [vmem:[#allocation8 + $0x58] sm:$0xff] %v65
    %91 = vst [vmem:[#allocation8 + $0x60] sm:$0xff] %v66
    %92 = vst [vmem:[#allocation8 + $0x68] sm:$0xff] %v67
    %93 = vst [vmem:[#allocation8 + $0x70] sm:$0xff] %v68
    %94 = vst [vmem:[#allocation8 + $0x78] sm:$0xff] %v69
    %95 = vst [vmem:[#allocation8 + $0x80] sm:$0xff] %v70
    %96 = vst [vmem:[#allocation8 + $0x88] sm:$0xff] %v71
    %97 = vst [vmem:[#allocation8 + $0x90] sm:$0xff] %v72
    %98 = vst [vmem:[#allocation8 + $0x98] sm:$0xff] %v73
    %99 = vst [vmem:[#allocation8 + $0xa0] sm:$0xff] %v74
    %100 = vst [vmem:[#allocation8 + $0xa8] sm:$0xff] %v75
    %101 = vst [vmem:[#allocation8 + $0xb0] sm:$0xff] %v76
    %102 = vst [vmem:[#allocation8 + $0xb8] sm:$0xff] %v77
    %103 = vst [vmem:[#allocation8 + $0xc0] sm:$0xff] %v78
    %v104 = vld [vmem:[#allocation5] sm:$0xff]
    %v105 = vld [vmem:[#allocation5 + $0x8] sm:$0xff]
    %v106 = vld [vmem:[#allocation5 + $0x10] sm:$0xff]
    %v107 = vld [vmem:[#allocation5 + $0x18] sm:$0xff]
    %v108 = vld [vmem:[#allocation5 + $0x20] sm:$0xff]
    %v109 = vld [vmem:[#allocation5 + $0x28] sm:$0xff]
    %v110 = vld [vmem:[#allocation5 + $0x30] sm:$0xff]
    %v111 = vld [vmem:[#allocation5 + $0x38] sm:$0xff]
    %v112 = vld [vmem:[#allocation5 + $0x40] sm:$0xff]
    %v113 = vld [vmem:[#allocation5 + $0x48] sm:$0xff]
    %v114 = vld [vmem:[#allocation5 + $0x50] sm:$0xff]
    %v115 = vld [vmem:[#allocation5 + $0x58] sm:$0xff]
    %v116 = vld [vmem:[#allocation5 + $0x60] sm:$0xff]
    %v117 = vld [vmem:[#allocation5 + $0x68] sm:$0xff]
    %v118 = vld [vmem:[#allocation5 + $0x70] sm:$0xff]
    %v119 = vld [vmem:[#allocation5 + $0x78] sm:$0xff]
    %120 = vst [vmem:[#allocation9] sm:$0xff] %v104
    %121 = vst [vmem:[#allocation9 + $0x8] sm:$0xff] %v105
    %122 = vst [vmem:[#allocation9 + $0x10] sm:$0xff] %v106
    %123 = vst [vmem:[#allocation9 + $0x18] sm:$0xff] %v107
    %124 = vst [vmem:[#allocation9 + $0x20] sm:$0xff] %v108
    %125 = vst [vmem:[#allocation9 + $0x28] sm:$0xff] %v109
    %126 = vst [vmem:[#allocation9 + $0x30] sm:$0xff] %v110
    %127 = vst [vmem:[#allocation9 + $0x38] sm:$0xff] %v111
    %128 = vst [vmem:[#allocation9 + $0x40] sm:$0xff] %v112
    %129 = vst [vmem:[#allocation9 + $0x48] sm:$0xff] %v113
    %130 = vst [vmem:[#allocation9 + $0x50] sm:$0xff] %v114
    %131 = vst [vmem:[#allocation9 + $0x58] sm:$0xff] %v115
    %132 = vst [vmem:[#allocation9 + $0x60] sm:$0xff] %v116
    %133 = vst [vmem:[#allocation9 + $0x68] sm:$0xff] %v117
    %134 = vst [vmem:[#allocation9 + $0x70] sm:$0xff] %v118
    %135 = vst [vmem:[#allocation9 + $0x78] sm:$0xff] %v119
    %v136 = vld [vmem:[#allocation7] sm:$0xff]
    %v137 = vld [vmem:[#allocation7 + $0x8] sm:$0xff]
    %v138 = vld [vmem:[#allocation7 + $0x10] sm:$0xff]
    %v139 = vld [vmem:[#allocation7 + $0x18] sm:$0xff]
    %v140 = vld [vmem:[#allocation7 + $0x20] sm:$0xff]
    %v141 = vld [vmem:[#allocation7 + $0x28] sm:$0xff]
    %v142 = vld [vmem:[#allocation7 + $0x30] sm:$0xff]
    %v143 = vld [vmem:[#allocation7 + $0x38] sm:$0xff]
    %v144 = vld [vmem:[#allocation7 + $0x40] sm:$0xff]
    %v145 = vld [vmem:[#allocation7 + $0x48] sm:$0xff]
    %v146 = vld [vmem:[#allocation7 + $0x50] sm:$0xff]
    %v147 = vld [vmem:[#allocation7 + $0x58] sm:$0xff]
    %v148 = vld [vmem:[#allocation7 + $0x60] sm:$0xff]
    %v149 = vld [vmem:[#allocation7 + $0x68] sm:$0xff]
    %v150 = vld [vmem:[#allocation7 + $0x70] sm:$0xff]
    %v151 = vld [vmem:[#allocation7 + $0x78] sm:$0xff]
    %v152 = vld [vmem:[#allocation7 + $0x80] sm:$0xff]
    %v153 = vld [vmem:[#allocation7 + $0x88] sm:$0xff]
    %v154 = vld [vmem:[#allocation7 + $0x90] sm:$0xff]
    %v155 = vld [vmem:[#allocation7 + $0x98] sm:$0xff]
    %v156 = vld [vmem:[#allocation7 + $0xa0] sm:$0xff]
    %v157 = vld [vmem:[#allocation7 + $0xa8] sm:$0xff]
    %v158 = vld [vmem:[#allocation7 + $0xb0] sm:$0xff]
    %v159 = vld [vmem:[#allocation7 + $0xb8] sm:$0xff]
    %v160 = vld [vmem:[#allocation7 + $0xc0] sm:$0xff]
    %161 = vst [vmem:[#allocation11] sm:$0xff] %v136
    %162 = vst [vmem:[#allocation11 + $0x8] sm:$0xff] %v137
    %163 = vst [vmem:[#allocation11 + $0x10] sm:$0xff] %v138
    %164 = vst [vmem:[#allocation11 + $0x18] sm:$0xff] %v139
    %165 = vst [vmem:[#allocation11 + $0x20] sm:$0xff] %v140
    %166 = vst [vmem:[#allocation11 + $0x28] sm:$0xff] %v141
    %167 = vst [vmem:[#allocation11 + $0x30] sm:$0xff] %v142
    %168 = vst [vmem:[#allocation11 + $0x38] sm:$0xff] %v143
    %169 = vst [vmem:[#allocation11 + $0x40] sm:$0xff] %v144
    %170 = vst [vmem:[#allocation11 + $0x48] sm:$0xff] %v145
    %171 = vst [vmem:[#allocation11 + $0x50] sm:$0xff] %v146
    %172 = vst [vmem:[#allocation11 + $0x58] sm:$0xff] %v147
    %173 = vst [vmem:[#allocation11 + $0x60] sm:$0xff] %v148
    %174 = vst [vmem:[#allocation11 + $0x68] sm:$0xff] %v149
    %175 = vst [vmem:[#allocation11 + $0x70] sm:$0xff] %v150
    %176 = vst [vmem:[#allocation11 + $0x78] sm:$0xff] %v151
    %177 = vst [vmem:[#allocation11 + $0x80] sm:$0xff] %v152
    %178 = vst [vmem:[#allocation11 + $0x88] sm:$0xff] %v153
    %179 = vst [vmem:[#allocation11 + $0x90] sm:$0xff] %v154
    %180 = vst [vmem:[#allocation11 + $0x98] sm:$0xff] %v155
    %181 = vst [vmem:[#allocation11 + $0xa0] sm:$0xff] %v156
    %182 = vst [vmem:[#allocation11 + $0xa8] sm:$0xff] %v157
    %183 = vst [vmem:[#allocation11 + $0xb0] sm:$0xff] %v158
    %184 = vst [vmem:[#allocation11 + $0xb8] sm:$0xff] %v159
    %185 = vst [vmem:[#allocation11 + $0xc0] sm:$0xff] %v160
    // Predicated region
    $region26: #{tpu_custom_call.1} parent=1 // pred_check
      _
    $region27: #{tpu_custom_call.1} parent=1 // pred_check_branch
      %187 = sbr.rel (0) target = $region29
    $region28: #{tpu_custom_call.1} parent=1 // pred_region
      %s189 = ssub.s32 3200, 3200
      %190 = vsyncadd [#allocation4], %s189
      %s192 = sshll.u32 [#allocation8], 4
      %s193 = int_to_ptr.vmem [resolvable:$true] %s192
      %195 = dma.vmem_to_hbm [thread:$0]  %s193, 3200, %s3, [#allocation4]
    $region29: #{tpu_custom_call.1} parent=1 // pred_fallthru
      _
    // Predicated region
    $region30: #{tpu_custom_call.1} parent=1 // pred_check
      _
    $region31: #{tpu_custom_call.1} parent=1 // pred_check_branch
      %197 = sbr.rel (0) target = $region33
    $region32: #{tpu_custom_call.1} parent=1 // pred_region
      %s199 = ssub.s32 2048, 2048
      %200 = vsyncadd [#allocation10], %s199
      %s202 = sshll.u32 [#allocation9], 4
      %s203 = int_to_ptr.vmem [resolvable:$true] %s202
      %205 = dma.vmem_to_hbm [thread:$0]  %s203, 2048, %s4, [#allocation10]
    $region33: #{tpu_custom_call.1} parent=1 // pred_fallthru
      _
    // Predicated region
    $region34: #{tpu_custom_call.1} parent=1 // pred_check
      _
    $region35: #{tpu_custom_call.1} parent=1 // pred_check_branch
      %207 = sbr.rel (0) target = $region37
    $region36: #{tpu_custom_call.1} parent=1 // pred_region
      %s209 = ssub.s32 3200, 3200
      %210 = vsyncadd [#allocation10], %s209
      %s212 = sshll.u32 [#allocation11], 4
      %s213 = int_to_ptr.vmem [resolvable:$true] %s212
      %215 = dma.vmem_to_hbm [thread:$0]  %s213, 3200, %s5, [#allocation10]
    $region37: #{tpu_custom_call.1} parent=1 // pred_fallthru
      _
    // Predicated region
    $region38: #{tpu_custom_call.1} parent=1 // pred_check
      _
    $region39: #{tpu_custom_call.1} parent=1 // pred_check_branch
      %217 = sbr.rel (0) target = $region41
    $region40: #{tpu_custom_call.1} parent=1 // pred_region
      %218 = dma.done [#allocation4], 3200
    $region41: #{tpu_custom_call.1} parent=1 // pred_fallthru
      _
    // Predicated region
    $region42: #{tpu_custom_call.1} parent=1 // pred_check
      _
    $region43: #{tpu_custom_call.1} parent=1 // pred_check_branch
      %220 = sbr.rel (0) target = $region45
    $region44: #{tpu_custom_call.1} parent=1 // pred_region
      %221 = dma.done [#allocation10], 2048
    $region45: #{tpu_custom_call.1} parent=1 // pred_fallthru
      _
    // Predicated region
    $region46: #{tpu_custom_call.1} parent=1 // pred_check
      _
    $region47: #{tpu_custom_call.1} parent=1 // pred_check_branch
      %223 = sbr.rel (0) target = $region49
    $region48: #{tpu_custom_call.1} parent=1 // pred_region
      %224 = dma.done [#allocation10], 3200
    $region49: #{tpu_custom_call.1} parent=1 // pred_fallthru
      _
    %225 = vsyncpa [#allocation3], 1
    %226 = vsyncpa [#allocation6], 1
    %227 = vsyncpa [#allocation4], 1
    %228 = vsyncpa [#allocation10], 1

</llo_original>
